<compile_context>
chip_gen: v5e
topology: v5e:2x2
jax: 0.10.0
libtpu: 0.0.40
codegen_flags: <defaults>
</compile_context>

<pallas_src>
import functools

import jax
import jax.numpy as jnp
from jax.experimental import pallas as pl
from jax.experimental.pallas import tpu as pltpu


def _vmem_capacity_bytes():
    """Generation-aware VMEM capacity (v5e/v6e: 128 MiB, v7x: 64 MiB per TC)."""
    try:
        info = pltpu.get_tpu_info()
        cap = int(getattr(info, "vmem_capacity_bytes", 0) or 0)
        if cap > 0:
            return cap
    except Exception:
        pass
    return 64 * 1024 * 1024  # conservative fallback (smallest generation: v7x)


def _prenorm_kernel(x_ref, w_ref, b_ref, o_ref, *, eps, inv_c, compute_dtype):
    # x_ref: (1, C, TILE_HW)   w_ref: (C, C) folded weight   b_ref: (C, 1) folded bias
    x = x_ref[0].astype(compute_dtype)                       # (C, T); no-op if same dtype

    # --- two-pass (mean-centered) LayerNorm stats over the channel (sublane) axis ---
    mean = jnp.sum(x, axis=0, keepdims=True, dtype=jnp.float32) * inv_c       # (1, T) f32
    xc = x - mean.astype(compute_dtype)                                        # (C, T)
    var = jnp.sum(xc * xc, axis=0, keepdims=True, dtype=jnp.float32) * inv_c   # biased var
    std = jnp.sqrt(var)
    inv = pl.reciprocal(std + eps, approx=True)               # (1, T) f32 on the EUP slot
    normed = xc * inv.astype(compute_dtype)                   # (C, T)

    # --- fn = 1x1 conv with LN affine folded in: (C,C) @ (C,T) on the MXU ---
    out = jnp.dot(w_ref[...], normed, preferred_element_type=jnp.float32)
    out = out + b_ref[...]                                    # (C, 1) f32 bias broadcast
    o_ref[0] = out.astype(o_ref.dtype)


def prenorm(x_nchw, g, b, conv_w, conv_b, *, eps=1e-5):
    """PreNorm forward.

    x_nchw : (N, C, H, W)
    g, b   : (1, C, 1, 1)  LayerNorm affine params
    conv_w : (C, C)        1x1 conv weight (fn)
    conv_b : (C,)          1x1 conv bias   (fn)
    """
    N, C, H, W = x_nchw.shape
    HW = H * W

    # bf16 models keep the elementwise path + MXU operands in bf16 (v6e/v7x bf16
    # VALU); f32 models stay f32 for accuracy.
    compute_dtype = jnp.bfloat16 if x_nchw.dtype == jnp.bfloat16 else jnp.float32

    x3 = x_nchw.reshape(N, C, HW)

    # --- fold LayerNorm affine into the 1x1 conv (exact: fn is linear), in fp32 ---
    g_vec = g.reshape(C).astype(jnp.float32)
    b_vec = b.reshape(C).astype(jnp.float32)
    w32 = conv_w.astype(jnp.float32)
    w_folded = (w32 * g_vec[None, :]).astype(compute_dtype)            # scale columns by g
    b_folded = (w32 @ b_vec + conv_b.astype(jnp.float32)).reshape(C, 1)  # stays f32

    # --- VMEM-budgeted, generation-aware spatial tile (lane axis, multiple of 128) ---
    vmem_cap = _vmem_capacity_bytes()
    itemsize_x = jnp.dtype(x_nchw.dtype).itemsize
    itemsize_c = jnp.dtype(compute_dtype).itemsize
    # Per lane-column resident bytes: double-buffered x + out tiles, ~2 full-tile
    # compute-dtype temporaries (xc, normed), one f32 matmul output, f32 stat rows.
    bytes_per_col = 4 * C * itemsize_x + 2 * C * itemsize_c + 4 * C + 16
    weight_bytes = C * C * itemsize_c + 4 * C                 # single-buffered residents
    budget = max(int(0.4 * vmem_cap) - weight_bytes, 256 * 1024)
    MAX_TILE = 4096                                           # amortize ~0.35us/grid-step
    if HW < 128:
        TILE_HW = HW                                          # block == full lane dim (allowed)
    else:
        budget_tile = max(128, (budget // bytes_per_col) // 128 * 128)
        TILE_HW = min((HW // 128) * 128, MAX_TILE, budget_tile)
    n_tiles = pl.cdiv(HW, TILE_HW)                            # ragged tail handled by Pallas
    vmem_limit_bytes = int(max(32 * 1024 * 1024,
                               min(0.7 * vmem_cap, 100 * 1024 * 1024)))

    kernel = functools.partial(_prenorm_kernel, eps=float(eps), inv_c=1.0 / C,
                               compute_dtype=compute_dtype)

    # Single-buffer the constant-index weight/bias blocks (saves VMEM, esp. v7x).
    buffer_once = {"pipeline_mode": pl.Buffered(1)} if hasattr(pl, "Buffered") else {}

    cost = pl.CostEstimate(
        flops=2 * C * C * HW * N + 7 * C * HW * N,
        transcendentals=2 * HW * N,
        bytes_accessed=2 * N * C * HW * itemsize_x + C * C * itemsize_c,
    )

    out3 = pl.pallas_call(
        kernel,
        out_shape=jax.ShapeDtypeStruct((N, C, HW), x_nchw.dtype),
        grid_spec=pltpu.PrefetchScalarGridSpec(
            num_scalar_prefetch=0,
            grid=(N, n_tiles),
            in_specs=[
                pl.BlockSpec((1, C, TILE_HW), lambda n, t: (n, 0, t)),      # x tile
                pl.BlockSpec((C, C), lambda n, t: (0, 0), **buffer_once),   # folded w
                pl.BlockSpec((C, 1), lambda n, t: (0, 0), **buffer_once),   # folded b
            ],
            out_specs=pl.BlockSpec((1, C, TILE_HW), lambda n, t: (n, 0, t)),
        ),
        compiler_params=pltpu.CompilerParams(
            dimension_semantics=("parallel", "parallel"),
            vmem_limit_bytes=vmem_limit_bytes),
        cost_estimate=cost,
    )(x3, w_folded, b_folded)

    return out3.reshape(N, C, H, W)


def _reference(x, g, b, conv_w, conv_b, eps=1e-5):
    # Pure-JAX reference mirroring the PyTorch code (two-pass stats).
    mean = jnp.mean(x, axis=1, keepdims=True)
    var = jnp.var(x, axis=1, keepdims=True)          # unbiased=False
    std = jnp.sqrt(var)
    normed = (x - mean) / (std + eps) * g + b
    out = jnp.einsum('oc,nchw->nohw', conv_w, normed) + conv_b[None, :, None, None]
    return out


if __name__ == "__main__":
    key = jax.random.PRNGKey(0)
    k1, k2, k3 = jax.random.split(key, 3)

    N, C, H, W = 2, 4, 16, 16
    x = jax.random.normal(k1, (N, C, H, W), dtype=jnp.float32)

    # LayerNorm params exactly as in __init__: ones / zeros.
    g = jnp.ones((1, C, 1, 1), dtype=jnp.float32)
    b = jnp.zeros((1, C, 1, 1), dtype=jnp.float32)

    # fn = 1x1 Conv2d(C, C): deterministic synthetic weights.
    conv_w = jax.random.normal(k2, (C, C), dtype=jnp.float32) * 0.1
    conv_b = jax.random.normal(k3, (C,), dtype=jnp.float32) * 0.1

    out = prenorm(x, g, b, conv_w, conv_b)
    out = jax.block_until_ready(out)

    ref = _reference(x, g, b, conv_w, conv_b)
    assert out.shape == (N, C, H, W)
    # Tolerance accounts for the approximate (EUP) reciprocal of (std + eps).
    assert jnp.allclose(out, ref, atol=2e-3, rtol=2e-3), "mismatch vs reference"

    print("KERNEL_OK")
</pallas_src>

<mosaic_0001>
module attributes {stable_mosaic.version = 11 : i64} {
  func.func @_prenorm_kernel(%arg0: i32, %arg1: i32, %arg2: memref<1x4x256xf32, #tpu.memory_space<vmem>>, %arg3: memref<4x4xf32, #tpu.memory_space<vmem>>, %arg4: memref<4x1xf32, #tpu.memory_space<vmem>>, %arg5: memref<1x4x256xf32, #tpu.memory_space<vmem>>) attributes {dimension_semantics = [#tpu.dimension_semantics<parallel>, #tpu.dimension_semantics<parallel>], iteration_bounds = array<i64: 2, 1>, scalar_prefetch = 0 : i64, scratch_operands = 0 : i64, tpu.core_type = #tpu.core_type<tc>, window_params = [{transform_indices = @transform_0, window_bounds = array<i64: 1, 4, 256>}, {pipeline_mode = #tpu.pipeline_mode<synchronous>, transform_indices = @transform_1, window_bounds = array<i64: 4, 4>}, {pipeline_mode = #tpu.pipeline_mode<synchronous>, transform_indices = @transform_2, window_bounds = array<i64: 4, 1>}, {transform_indices = @transform_3, window_bounds = array<i64: 1, 4, 256>}]} {
    %c0 = arith.constant 0 : index
    %c0_0 = arith.constant 0 : index
    %c0_1 = arith.constant 0 : index
    %0 = vector.load %arg2[%c0, %c0_0, %c0_1] : memref<1x4x256xf32, #tpu.memory_space<vmem>>, vector<1x4x256xf32>
    %1 = vector.shape_cast %0 : vector<1x4x256xf32> to vector<4x256xf32>
    %cst = arith.constant dense<0.000000e+00> : vector<256xf32>
    %2 = vector.multi_reduction <add>, %1, %cst [0] : vector<4x256xf32> to vector<256xf32>
    %3 = vector.shape_cast %2 : vector<256xf32> to vector<1x256xf32>
    %cst_2 = arith.constant 2.500000e-01 : f32
    %4 = vector.broadcast %cst_2 : f32 to vector<1x256xf32>
    %5 = arith.mulf %3, %4 : vector<1x256xf32>
    %6 = vector.broadcast %5 : vector<1x256xf32> to vector<4x256xf32>
    %7 = arith.subf %1, %6 : vector<4x256xf32>
    %8 = arith.mulf %7, %7 : vector<4x256xf32>
    %cst_3 = arith.constant dense<0.000000e+00> : vector<256xf32>
    %9 = vector.multi_reduction <add>, %8, %cst_3 [0] : vector<4x256xf32> to vector<256xf32>
    %10 = vector.shape_cast %9 : vector<256xf32> to vector<1x256xf32>
    %cst_4 = arith.constant 2.500000e-01 : f32
    %11 = vector.broadcast %cst_4 : f32 to vector<1x256xf32>
    %12 = arith.mulf %10, %11 : vector<1x256xf32>
    %13 = math.sqrt %12 : vector<1x256xf32>
    %cst_5 = arith.constant 9.99999974E-6 : f32
    %14 = vector.broadcast %cst_5 : f32 to vector<1x256xf32>
    %15 = arith.addf %13, %14 : vector<1x256xf32>
    %16 = tpu.reciprocal %15 {approx = true} : vector<1x256xf32> -> vector<1x256xf32>
    %17 = vector.broadcast %16 : vector<1x256xf32> to vector<4x256xf32>
    %18 = arith.mulf %7, %17 : vector<4x256xf32>
    %c0_6 = arith.constant 0 : index
    %c0_7 = arith.constant 0 : index
    %19 = vector.load %arg3[%c0_6, %c0_7] : memref<4x4xf32, #tpu.memory_space<vmem>>, vector<4x4xf32>
    %cst_8 = arith.constant dense<0.000000e+00> : vector<4x256xf32>
    %20 = tpu.matmul %19, %18, %cst_8 {dimension_numbers = #tpu.dot_dimension_numbers<[1], [0], [0], [1], [0, 0, 1, 1], [], []>} : vector<4x4xf32>, vector<4x256xf32>, vector<4x256xf32> -> vector<4x256xf32>
    %c0_9 = arith.constant 0 : index
    %c0_10 = arith.constant 0 : index
    %21 = vector.load %arg4[%c0_9, %c0_10] : memref<4x1xf32, #tpu.memory_space<vmem>>, vector<4x1xf32>
    %22 = vector.broadcast %21 : vector<4x1xf32> to vector<4x256xf32>
    %23 = arith.addf %20, %22 : vector<4x256xf32>
    %c0_11 = arith.constant 0 : index
    %c0_12 = arith.constant 0 : index
    %c0_13 = arith.constant 0 : index
    %24 = vector.load %arg5[%c0_11, %c0_12, %c0_13] : memref<1x4x256xf32, #tpu.memory_space<vmem>>, vector<1x4x256xf32>
    %25 = vector.shape_cast %24 : vector<1x4x256xf32> to vector<4x256xf32>
    %26 = vector.shape_cast %23 : vector<4x256xf32> to vector<1x4x256xf32>
    tpu.vector_store %arg5[%c0_11, %c0_12, %c0_13], %26 {strides = array<i32>} : memref<1x4x256xf32, #tpu.memory_space<vmem>>, vector<1x4x256xf32>,
    return
  }
  func.func @transform_0(%arg0: i32, %arg1: i32) -> (i32, i32, i32) {
    %c0_i32 = arith.constant 0 : i32
    %c0_i32_0 = arith.constant 0 : i32
    return %arg0, %c0_i32, %arg1 : i32, i32, i32
  }
  func.func @transform_1(%arg0: i32, %arg1: i32) -> (i32, i32) {
    %c0_i32 = arith.constant 0 : i32
    %c0_i32_0 = arith.constant 0 : i32
    %c0_i32_1 = arith.constant 0 : i32
    return %c0_i32, %c0_i32_0 : i32, i32
  }
  func.func @transform_2(%arg0: i32, %arg1: i32) -> (i32, i32) {
    %c0_i32 = arith.constant 0 : i32
    %c0_i32_0 = arith.constant 0 : i32
    %c0_i32_1 = arith.constant 0 : i32
    return %c0_i32, %c0_i32_0 : i32, i32
  }
  func.func @transform_3(%arg0: i32, %arg1: i32) -> (i32, i32, i32) {
    %c0_i32 = arith.constant 0 : i32
    %c0_i32_0 = arith.constant 0 : i32
    return %arg0, %c0_i32, %arg1 : i32, i32, i32
  }
}

</mosaic_0001>

<llo_original>
// kernel: tpu_custom_call.1
$region0: #{tpu_custom_call.1}
  #allocation0 [shape = 'u32[]', space=smem, size = 0x4, offset = 0x4, fixed_abs, tag = 'smem constant byte address 0x4 - core index']
  #allocation1 [shape = 'u32[72,128]{1,0:T(1,128)}', space=vmem, size = 0x9000, scoped, tag = 'internal scratch']
  %s0 = inlined_call_operand.hbm [shape: f32[2,4,256], index: 0, kind: input, shape index: {}]
  %s1 = inlined_call_operand.vmem [shape: f32[4,4], index: 1, kind: input, shape index: {}]
  %s2 = inlined_call_operand.vmem [shape: f32[4,1], index: 2, kind: input, shape index: {}]
  %s3 = inlined_call_operand.hbm [shape: f32[2,4,256], index: 3, kind: output, shape index: {}]
  %s4 = sld [smem:[#allocation0]]
  $region49: #{tpu_custom_call.1} parent=0
    _
  %s6 = ssub.s32 1, %s4
  %s7 = scalar_select 0, %s6, %s4
  $region1: #{tpu_custom_call.1} parent=0
    #allocation2 [shape = 'u8[8192]{0}', space=vmem, size = 0x2000, scoped, tag = 'input window, operand 0']
    #allocation3 [shape = 's32[2]{0}', space=sflag, size = 0x8, scoped, tag = 'scoped memory for tpu_custom_call.1']
    #allocation4 [shape = 's32[2]{0}', space=sflag, size = 0x8, scoped, tag = 'scoped memory for tpu_custom_call.1']
    #allocation5 [shape = 'u8[8192]{0}', space=vmem, size = 0x2000, scoped, tag = 'output window, operand 0']
    %8 = vsyncpa [#allocation3], 0
    %s9 = scalar_lea.sflag [#allocation3], 1
    %10 = vsyncpa %s9, 0
    %11 = vsyncpa [#allocation4], 0
    %s12 = scalar_lea.sflag [#allocation4], 1
    %13 = vsyncpa %s12, 0
    loop: start=0, step=1, limit=4
    $region2: #{tpu_custom_call.1} parent=1 // loop_pre_header
      _
    $region3: #{tpu_custom_call.1} parent=1 // loop_header
      %s15 = sphi 0, %s19
      %p16 = scmp.ge.s32.totalorder %s15, 4
      %s22 = sphi 0, %s34
      %s23 = sphi 0, %s30
      %s24 = sphi 0, %s22
      %s25 = sphi 0, %s23
      %s26 = sphi 0, %s24
      %s27 = sphi 0, %s25
      %s39 = sphi 0, %s41
      %s42 = sphi 0, %s39
      %s43 = sphi 0, %s42
      %s59 = sphi 0, %s43
      %s63 = sphi 0, %s63
      %s65 = sphi 0, %s63
      %s66 = sphi 0, %s65
      %s80 = sphi 0, %s66
      %s84 = sphi 0, %s84
      %s86 = sphi 0, %s84
      %s87 = sphi 0, %s86
      %s101 = sphi 0, %s87
      %s109 = sphi 0, %s111
      %s112 = sphi 0, %s109
      %s113 = sphi 0, %s112
      %s129 = sphi 0, %s113
    $region4: #{tpu_custom_call.1} parent=1 // loop_header_branch
      %18 = sbr.rel (%p16) target = $region8
    $region5: #{tpu_custom_call.1} parent=1 // loop_body
      %s20 = ssub.s32 %s15, 1
      %s21 = ssub.s32 %s15, 2
      %s28 = sadd.s32 1, %s23
      %p29 = scmp.ge.s32.totalorder %s28, 1
      %s30 = scalar_select %p29, 0, %s28
      %s31 = sadd.s32 1, %s22
      %s32 = scalar_select %p29, %s31, %s22
      %p33 = scmp.ge.s32.totalorder %s32, 2
      %s34 = scalar_select %p33, 0, %s32
      %s35 = ssub.s32 %s22, %s34
      %s36 = ssub.s32 %s23, %s30
      %s37 = sor.u32 %s35, %s36
      %p38 = scmp.eq.s32.totalorder %s37, 0
      %s40 = sadd.s32 %s39, 1
      %s41 = scalar_select %p38, %s39, %s40
      %p44 = pneg %p38
      %p45 = scmp.eq.s32.totalorder %s15, 1
      %p46 = por %p44, %p45
      %p47 = scmp.ne.s32.totalorder %s39, %s42
      %p48 = scmp.eq.s32.totalorder %s15, 0
      %p49 = por %p47, %p48
      %p50 = scmp.ne.s32.totalorder %s39, %s42
      %p51 = scmp.eq.s32.totalorder %s20, 1
      %p52 = por %p50, %p51
      %p53 = scmp.ne.s32.totalorder %s42, %s43
      %p54 = scmp.eq.s32.totalorder %s20, 0
      %p55 = por %p53, %p54
      %p56 = scmp.ne.s32.totalorder %s42, %s43
      %p57 = scmp.eq.s32.totalorder %s21, 1
      %p58 = por %p56, %p57
      %p60 = scmp.ne.s32.totalorder %s43, %s59
      %p61 = scmp.eq.s32.totalorder %s21, 0
      %p62 = por %p60, %p61
      %s64 = sadd.s32 %s63, 1
      %p67 = scmp.eq.s32.totalorder %s15, 1
      %p68 = scmp.ne.s32.totalorder %s63, %s65
      %p69 = scmp.eq.s32.totalorder %s15, 0
      %p70 = por %p68, %p69
      %p71 = scmp.ne.s32.totalorder %s63, %s65
      %p72 = scmp.eq.s32.totalorder %s20, 1
      %p73 = por %p71, %p72
      %p74 = scmp.ne.s32.totalorder %s65, %s66
      %p75 = scmp.eq.s32.totalorder %s20, 0
      %p76 = por %p74, %p75
      %p77 = scmp.ne.s32.totalorder %s65, %s66
      %p78 = scmp.eq.s32.totalorder %s21, 1
      %p79 = por %p77, %p78
      %p81 = scmp.ne.s32.totalorder %s66, %s80
      %p82 = scmp.eq.s32.totalorder %s21, 0
      %p83 = por %p81, %p82
      %s85 = sadd.s32 %s84, 1
      %p88 = scmp.eq.s32.totalorder %s15, 1
      %p89 = scmp.ne.s32.totalorder %s84, %s86
      %p90 = scmp.eq.s32.totalorder %s15, 0
      %p91 = por %p89, %p90
      %p92 = scmp.ne.s32.totalorder %s84, %s86
      %p93 = scmp.eq.s32.totalorder %s20, 1
      %p94 = por %p92, %p93
      %p95 = scmp.ne.s32.totalorder %s86, %s87
      %p96 = scmp.eq.s32.totalorder %s20, 0
      %p97 = por %p95, %p96
      %p98 = scmp.ne.s32.totalorder %s86, %s87
      %p99 = scmp.eq.s32.totalorder %s21, 1
      %p100 = por %p98, %p99
      %p102 = scmp.ne.s32.totalorder %s87, %s101
      %p103 = scmp.eq.s32.totalorder %s21, 0
      %p104 = por %p102, %p103
      %s105 = ssub.s32 %s22, %s34
      %s106 = ssub.s32 %s23, %s30
      %s107 = sor.u32 %s105, %s106
      %p108 = scmp.eq.s32.totalorder %s107, 0
      %s110 = sadd.s32 %s109, 1
      %s111 = scalar_select %p108, %s109, %s110
      %p114 = pneg %p108
      %p115 = scmp.eq.s32.totalorder %s15, 1
      %p116 = por %p114, %p115
      %p117 = scmp.ne.s32.totalorder %s109, %s112
      %p118 = scmp.eq.s32.totalorder %s15, 0
      %p119 = por %p117, %p118
      %p120 = scmp.ne.s32.totalorder %s109, %s112
      %p121 = scmp.eq.s32.totalorder %s20, 1
      %p122 = por %p120, %p121
      %p123 = scmp.ne.s32.totalorder %s112, %s113
      %p124 = scmp.eq.s32.totalorder %s20, 0
      %p125 = por %p123, %p124
      %p126 = scmp.ne.s32.totalorder %s112, %s113
      %p127 = scmp.eq.s32.totalorder %s21, 1
      %p128 = por %p126, %p127
      %p130 = scmp.ne.s32.totalorder %s113, %s129
      %p131 = scmp.eq.s32.totalorder %s21, 0
      %p132 = por %p130, %p131
      %p133 = scmp.le.s32.totalorder 1, %s15
      %p134 = scmp.lt.s32.totalorder %s15, 3
      %p135 = pnand %p133, %p134
      %p136 = pneg %p135
      // Predicated region
      $region9: #{tpu_custom_call.1} parent=5 // pred_check
        _
      $region10: #{tpu_custom_call.1} parent=5 // pred_check_branch
        %138 = sbr.rel (%p135) target = $region12
      $region11: #{tpu_custom_call.1} parent=5 // pred_region
        %s139 = ssub.s32 %s15, 1
        // Predicated region
        $region13: #{tpu_custom_call.1} parent=11 // pred_check
          %p140 = pneg %p76
        $region14: #{tpu_custom_call.1} parent=11 // pred_check_branch
          %142 = sbr.rel (%p140) target = $region16
        $region15: #{tpu_custom_call.1} parent=11 // pred_region
          _
        $region16: #{tpu_custom_call.1} parent=11 // pred_fallthru
          _
        // Predicated region
        $region17: #{tpu_custom_call.1} parent=11 // pred_check
          %p143 = pneg %p97
        $region18: #{tpu_custom_call.1} parent=11 // pred_check_branch
          %145 = sbr.rel (%p143) target = $region20
        $region19: #{tpu_custom_call.1} parent=11 // pred_region
          _
        $region20: #{tpu_custom_call.1} parent=11 // pred_fallthru
          _
      $region12: #{tpu_custom_call.1} parent=5 // pred_fallthru
        _
      %p146 = scmp.lt.s32.totalorder %s15, 2
      // Predicated region
      $region21: #{tpu_custom_call.1} parent=5 // pred_check
        %p147 = pneg %p146
      $region22: #{tpu_custom_call.1} parent=5 // pred_check_branch
        %149 = sbr.rel (%p147) target = $region24
      $region23: #{tpu_custom_call.1} parent=5 // pred_region
        // Predicated region
        $region25: #{tpu_custom_call.1} parent=23 // pred_check
          %p150 = pneg %p49
        $region26: #{tpu_custom_call.1} parent=23 // pred_check_branch
          %152 = sbr.rel (%p150) target = $region28
        $region27: #{tpu_custom_call.1} parent=23 // pred_region
          %s153 = sand.u32 %s39, 1
          %s154 = scalar_lea.sflag [#allocation3], %s153
          %s155 = sand.u32 %s39, 1
          %s156 = smul.addr %s155, 8
          %s157 = scalar_lea.vmem [#allocation2], %s156
          %s158 = smul.u32 2, %s23
          %160 = vsyncadd %s154, 0
          %s161 = smul.addr %s22, 2
          %s162 = sadd.s32 %s158, %s161
          %s163 = smul.addr %s162, 4
          %s164 = scalar_lea.hbm %s0, %s163
          %s166 = sshll.u32 %s164, 4
          %s167 = int_to_ptr.hbm [resolvable:$true] %s166
          %s168 = sshll.u32 %s157, 4
          %s169 = int_to_ptr.vmem [resolvable:$true] %s168
          %171 = dma.hbm_to_vmem [thread:$0]  %s167, 128, %s169, %s154
        $region28: #{tpu_custom_call.1} parent=23 // pred_fallthru
          _
      $region24: #{tpu_custom_call.1} parent=5 // pred_fallthru
        _
      %p172 = scmp.le.s32.totalorder 1, %s15
      %p173 = scmp.lt.s32.totalorder %s15, 3
      %p174 = pnand %p172, %p173
      %p175 = pneg %p174
      // Predicated region
      $region29: #{tpu_custom_call.1} parent=5 // pred_check
        _
      $region30: #{tpu_custom_call.1} parent=5 // pred_check_branch
        %177 = sbr.rel (%p174) target = $region32
      $region31: #{tpu_custom_call.1} parent=5 // pred_region
        %s178 = ssub.s32 %s15, 1
        %s179 = sand.u32 %s42, 1
        %s180 = scalar_lea.sflag [#allocation3], %s179
        %s181 = sand.u32 %s42, 1
        %s182 = smul.addr %s181, 8
        %s183 = scalar_lea.vmem [#allocation2], %s182
        // Predicated region
        $region33: #{tpu_custom_call.1} parent=31 // pred_check
          %p184 = pneg %p55
        $region34: #{tpu_custom_call.1} parent=31 // pred_check_branch
          %186 = sbr.rel (%p184) target = $region36
        $region35: #{tpu_custom_call.1} parent=31 // pred_region
          %188 = dma.done %s180, 128
        $region36: #{tpu_custom_call.1} parent=31 // pred_fallthru
          _
        %s189 = sand.u32 %s42, 1
        %s190 = scalar_lea.sflag [#allocation3], %s189
        %s191 = sand.u32 %s42, 1
        %s192 = smul.addr %s191, 8
        %s193 = scalar_lea.vmem [#allocation2], %s192
        %p194 = pneg %p55
        %p195 = pneg %p52
        %p196 = pneg %p76
        %p197 = pneg %p73
        %p198 = pneg %p97
        %p199 = pneg %p94
        %p200 = pneg %p125
        %p201 = pneg %p122
        %s202 = sand.u32 %s112, 1
        %s203 = scalar_lea.sflag [#allocation4], %s202
        %s204 = sand.u32 %s112, 1
        %s205 = smul.addr %s204, 8
        %s206 = scalar_lea.vmem [#allocation5], %s205
        %s207 = smul.u32 2, %s25
        %s208 = smul.u32 2, %s25
        %v209 = vld [vmem:[%s183] sm:$0xff]
        %211 = vst [vmem:[#allocation1] ss:$2 sm:$0xff] %v209
        %v212 = vld.sshfl [vmem:[#allocation1] sm:$0xff pattern:$0x75316420]
        %v213 = vld.sshfl [vmem:[#allocation1 + $0x8] sm:$0xff pattern:$0x75316420]
        %vm216 = vcmask 1043456
        %v217 = vsel %vm216, %v212, 0.0
        %v218 = vrot.slane %v217, 4
        %v219 = vadd.f32 %v217, %v218
        %v220 = vrot.slane %v219, 2
        %v221 = vadd.f32 %v219, %v220
        %v222 = vrot.slane %v221, 1
        %v223 = vadd.f32 %v221, %v222
        %v224 = vsel %vm216, %v213, 0.0
        %v225 = vrot.slane %v224, 4
        %v226 = vadd.f32 %v224, %v225
        %v227 = vrot.slane %v226, 2
        %v228 = vadd.f32 %v226, %v227
        %v229 = vrot.slane %v228, 1
        %v230 = vadd.f32 %v228, %v229
        %v231 = vmul.f32 %v223, 0.25
        %v232 = vmul.f32 %v230, 0.25
        %v235 = vrot.slane %v232, 4
        %v236 = vsel %vm216, %v231, %v235
        %v238 = vsub.f32 %v209, %v236
        %v239 = vmul.f32 %v238, %v238
        %241 = vst [vmem:[#allocation1] ss:$2 sm:$0xff] %v239
        %v242 = vld.sshfl [vmem:[#allocation1] sm:$0xff pattern:$0x75316420]
        %v243 = vld.sshfl [vmem:[#allocation1 + $0x8] sm:$0xff pattern:$0x75316420]
        %v246 = vsel %vm216, %v242, 0.0
        %v247 = vrot.slane %v246, 4
        %v248 = vadd.f32 %v246, %v247
        %v249 = vrot.slane %v248, 2
        %v250 = vadd.f32 %v248, %v249
        %v251 = vrot.slane %v250, 1
        %v252 = vadd.f32 %v250, %v251
        %v253 = vsel %vm216, %v243, 0.0
        %v254 = vrot.slane %v253, 4
        %v255 = vadd.f32 %v253, %v254
        %v256 = vrot.slane %v255, 2
        %v257 = vadd.f32 %v255, %v256
        %v258 = vrot.slane %v257, 1
        %v259 = vadd.f32 %v257, %v258
        %v260 = vmul.f32 %v252, 0.25
        %v261 = vmul.f32 %v259, 0.25
        %v262 = vrsqrt.pop %v260
        %v263 = vmul.f32 %v262, %v260
        %v264 = vmul.f32 %v263, %v262
        %v265 = vmul.f32 0.5, %v264
        %v266 = vsub.f32 1.5, %v265
        %v267 = vmul.f32 %v262, %v266
        %v268 = vmul.f32 %v260, %v267
        %vm269 = vcmp.eq.f32.partialorder %v260, inf
        %v270 = vsel %vm269, %v260, %v268
        %vm271 = vcmp.eq.f32.partialorder %v260, 0.0
        %v272 = vand.u32 %v260, 2147483648
        %v273 = vsel %vm271, %v272, %v270
        %v274 = vrsqrt.pop %v261
        %v275 = vmul.f32 %v274, %v261
        %v276 = vmul.f32 %v275, %v274
        %v277 = vmul.f32 0.5, %v276
        %v278 = vsub.f32 1.5, %v277
        %v279 = vmul.f32 %v274, %v278
        %v280 = vmul.f32 %v261, %v279
        %vm281 = vcmp.eq.f32.partialorder %v261, inf
        %v282 = vsel %vm281, %v261, %v280
        %vm283 = vcmp.eq.f32.partialorder %v261, 0.0
        %v284 = vand.u32 %v261, 2147483648
        %v285 = vsel %vm283, %v284, %v282
        %v286 = vadd.f32 %v273, 1e-05
        %v287 = vadd.f32 %v285, 1e-05
        %v288 = vrcp.pop %v286
        %v289 = vrcp.pop %v287
        %v292 = vrot.slane %v289, 4
        %v293 = vsel %vm216, %v288, %v292
        %v295 = vmul.f32 %v238, %v293
        %v296 = vld [vmem:[%s1] sm:$0xf]
        %v297 = vld [vmem:[%s2] sm:$0xf]
        %299 = vset.pattern.permute.xlu0 0
        %300 = vperm.xlu0 %299, %v297
        %v301 = vpop.permute.xlu0 %300
        %304 = vst [vmem:[#allocation1] ss:$2 sm:$0xff] %v295
        %v305 = vld.sshfl [vmem:[#allocation1] sm:$0xff pattern:$0x75316420]
        %v306 = vld.sshfl [vmem:[#allocation1 + $0x8] sm:$0xff pattern:$0x75316420]
        %vm307 = vcmask 31744
        %v309 = vsel %vm307, %v296, 0
        %v311 = vsel %vm216, %v305, 0
        %v313 = vsel %vm216, %v306, 0
        %315 = vmatpush.msra.mxu0 0.0
        %316 = vmatpush.msra.mxu0 0.0
        %317 = vmatpush.msra.mxu0 0.0
        %318 = vmatpush.msra.mxu0 0.0
        %319 = vmatpush.msra.mxu0 0.0
        %320 = vmatpush.msra.mxu0 0.0
        %321 = vmatpush.msra.mxu0 0.0
        %322 = vmatpush.msra.mxu0 0.0
        %323 = vmatpush.msra.mxu0 0.0
        %324 = vmatpush.msra.mxu0 0.0
        %325 = vmatpush.msra.mxu0 0.0
        %326 = vmatpush.msra.mxu0 0.0
        %327 = vmatpush.msra.mxu0 0.0
        %328 = vmatpush.msra.mxu0 0.0
        %329 = vmatpush.msra.mxu0 0.0
        %330 = vmatpush.msra.mxu0 %v311
        %331 = vmatmul.f32.gmra.mxu0 %v309
        %v332 = vpop.f32.mrf.mxu0
        %v333 = vadd.f32 %v301, %v332
        %334 = vdwg.mxu0
        %335 = vmatpush.msra.mxu0 0.0
        %336 = vmatpush.msra.mxu0 0.0
        %337 = vmatpush.msra.mxu0 0.0
        %338 = vmatpush.msra.mxu0 0.0
        %339 = vmatpush.msra.mxu0 0.0
        %340 = vmatpush.msra.mxu0 0.0
        %341 = vmatpush.msra.mxu0 0.0
        %342 = vmatpush.msra.mxu0 0.0
        %343 = vmatpush.msra.mxu0 0.0
        %344 = vmatpush.msra.mxu0 0.0
        %345 = vmatpush.msra.mxu0 0.0
        %346 = vmatpush.msra.mxu0 0.0
        %347 = vmatpush.msra.mxu0 0.0
        %348 = vmatpush.msra.mxu0 0.0
        %349 = vmatpush.msra.mxu0 0.0
        %350 = vmatpush.msra.mxu0 %v313
        %351 = vmatmul.f32.gmra.mxu0 %v309
        %v352 = vpop.f32.mrf.mxu0
        %v353 = vadd.f32 %v301, %v352
        %354 = vdwg.mxu0
        %v357 = vrot.slane %v353, 4
        %v358 = vsel %vm216, %v333, %v357
        %360 = vst [vmem:[%s206] sm:$0xff] %v358
        %s361 = sand.u32 %s112, 1
        %s362 = scalar_lea.sflag [#allocation4], %s361
        %s363 = sand.u32 %s112, 1
        %s364 = smul.addr %s363, 8
        %s365 = scalar_lea.vmem [#allocation5], %s364
        // Predicated region
        $region37: #{tpu_custom_call.1} parent=31 // pred_check
          %p366 = pneg %p122
        $region38: #{tpu_custom_call.1} parent=31 // pred_check_branch
          %368 = sbr.rel (%p366) target = $region40
        $region39: #{tpu_custom_call.1} parent=31 // pred_region
          %s369 = smul.u32 2, %s25
          %371 = vsyncadd %s362, 0
          %s372 = smul.addr %s24, 2
          %s373 = sadd.s32 %s369, %s372
          %s374 = smul.addr %s373, 4
          %s375 = scalar_lea.hbm %s3, %s374
          %s377 = sshll.u32 %s365, 4
          %s378 = int_to_ptr.vmem [resolvable:$true] %s377
          %s379 = sshll.u32 %s375, 4
          %s380 = int_to_ptr.hbm [resolvable:$true] %s379
          %382 = dma.vmem_to_hbm [thread:$0]  %s378, 128, %s380, %s362
        $region40: #{tpu_custom_call.1} parent=31 // pred_fallthru
          _
      $region32: #{tpu_custom_call.1} parent=5 // pred_fallthru
        _
      %p383 = scmp.le.s32.totalorder 2, %s15
      // Predicated region
      $region41: #{tpu_custom_call.1} parent=5 // pred_check
        %p384 = pneg %p383
      $region42: #{tpu_custom_call.1} parent=5 // pred_check_branch
        %386 = sbr.rel (%p384) target = $region44
      $region43: #{tpu_custom_call.1} parent=5 // pred_region
        %s387 = ssub.s32 %s15, 2
        // Predicated region
        $region45: #{tpu_custom_call.1} parent=43 // pred_check
          %p388 = pneg %p128
        $region46: #{tpu_custom_call.1} parent=43 // pred_check_branch
          %390 = sbr.rel (%p388) target = $region48
        $region47: #{tpu_custom_call.1} parent=43 // pred_region
          %s391 = sand.u32 %s113, 1
          %s392 = scalar_lea.sflag [#allocation4], %s391
          %s393 = sand.u32 %s113, 1
          %s394 = smul.addr %s393, 8
          %s395 = scalar_lea.vmem [#allocation5], %s394
          %397 = dma.done %s392, 128
        $region48: #{tpu_custom_call.1} parent=43 // pred_fallthru
          _
      $region44: #{tpu_custom_call.1} parent=5 // pred_fallthru
        _
    $region6: #{tpu_custom_call.1} parent=1 // loop_footer
      %s19 = sadd.s32 1, %s15
    $region7: #{tpu_custom_call.1} parent=1 // loop_footer_branch
      %14 = sbr.rel target = $region3
    $region8: #{tpu_custom_call.1} parent=1 // loop_exit
      _
    %398 = vsyncpa [#allocation3], 1
    %s399 = scalar_lea.sflag [#allocation3], 1
    %400 = vsyncpa %s399, 1
    %401 = vsyncpa [#allocation4], 1
    %s402 = scalar_lea.sflag [#allocation4], 1
    %403 = vsyncpa %s402, 1

</llo_original>
